<compile_context>
chip_gen: v7x
topology: tpu7x:2x2x1
jax: 0.10.0
libtpu: 0.0.40
codegen_flags: <defaults>
</compile_context>

<pallas_src>
import functools

import jax
import jax.numpy as jnp
import numpy as np
from jax import lax
from jax.experimental import pallas as pl
from jax.experimental.pallas import tpu as pltpu


def _attention_incorporation_kernel(x_ref, w_ref, scale_ref, o_ref, *, nb, c):
    """One grid step: `nb` images, each a lane-dense (C, HW) slab."""
    w = w_ref[...]                       # (2C, C): rows [0:C)=Wm^T, [C:2C)=Wc
    s_scale = scale_ref[0]
    c_scale = scale_ref[1]
    hw = x_ref.shape[-1]
    ones_row = jnp.ones((1, hw), jnp.float32)

    for i in range(nb):                  # static unroll; nb is small (<= 8)
        x = x_ref[i]                     # (C, HW)

        # Both 1x1 convs in one MXU pass: a = (Wr1^T Wr2)^T x ; m = Wc x.
        am = jnp.dot(w, x, preferred_element_type=jnp.float32)    # (2C, HW)
        a = am[:c]                                                # (C, HW)
        m = am[c:]                                                # (C, HW)

        # ---- Spatial attention: softmax over rows of s = x^T (Wr1^T Wr2) x ----
        # s[i,j] = sum_d a[d,i] x[d,j]   (contract dim 0 of both operands).
        s = lax.dot_general(a, x, (((0,), (0,)), ((), ())),
                            preferred_element_type=jnp.float32)   # (HW, HW)
        s = s - jnp.max(s, axis=-1, keepdims=True)
        e = jnp.exp(s)                                            # unnormalized probs
        # Row sums as a lane-dense (1, HW) row via a tiny MXU pass; this avoids
        # both an (HW,1)->(1,HW) relayout and a full (HW,HW) normalization pass.
        row_sum = lax.dot_general(ones_row, e, (((1,), (1,)), ((), ())),
                                  preferred_element_type=jnp.float32)  # (1, HW)
        # Fold the softmax normalization into the (C, HW) multiplier columns.
        m_scaled = m * pl.reciprocal(row_sum, approx=False)       # (C, HW)
        spatial = jnp.dot(m_scaled, e,
                          preferred_element_type=jnp.float32)     # (C, HW)

        # ---- Channel attention: softmax over rows of g = x x^T (tiny C x C) ----
        g = lax.dot_general(x, x, (((1,), (1,)), ((), ())),
                            preferred_element_type=jnp.float32)   # (C, C)
        g = g - jnp.max(g, axis=-1, keepdims=True)
        ge = jnp.exp(g)
        gp = ge * pl.reciprocal(jnp.sum(ge, axis=-1, keepdims=True), approx=False)
        chan = jnp.dot(gp, x, preferred_element_type=jnp.float32)  # (C, HW)

        # TODO(synk): on v6e/v7x the MXU feeds (e, gp, x) could be bf16-cast with
        # f32 accumulation; kept f32 so v5e stays fast and the 1e-3 check holds.
        out = 2.0 * x + s_scale * spatial + c_scale * chan
        o_ref[i] = out.astype(o_ref.dtype)


def _pick_batch_block(n, max_nb=8):
    """Largest images-per-step dividing N, preferring an even grid (v7x: 2 TCs)."""
    divisors = [d for d in range(1, min(n, max_nb) + 1) if n % d == 0]
    even = [d for d in divisors if (n // d) % 2 == 0]
    return max(even) if even else max(divisors)


def attention_incorporation(x_nchw, params, *, max_batch_block=8):
    """Forward pass of AttentionIncorporation(attention='sum'). x: (N,C,H,W) f32."""
    N, C, H, W = x_nchw.shape
    HW = H * W
    nb = _pick_batch_block(N, max_batch_block)

    wr1 = params["wr1"][:, :, 0, 0]            # (Cr, C)  conv_reduce1
    wr2 = params["wr2"][:, :, 0, 0]            # (Cr, C)  conv_reduce2
    wc = params["wc"][:, :, 0, 0]              # (C,  C)  multiplier conv

    # Fuse the two reduce convs. Pass (Wr1^T Wr2)^T = Wr2^T Wr1 so the kernel can
    # keep x in its natural (C, HW) layout for both matmuls.
    wm_t = jnp.dot(wr2.T, wr1, precision=lax.Precision.HIGHEST)   # (C, C)
    w_all = jnp.concatenate([wm_t, wc], axis=0)                   # (2C, C) one stream

    x = x_nchw.reshape(N, C, HW)               # free reshape, lane-dense (HW last)

    scales = jnp.concatenate(
        [params["scale_s"].reshape(1), params["scale_c"].reshape(1)]
    ).astype(jnp.float32)                      # (2,) -> SMEM

    # Advisory cost estimate (helps XLA schedule the custom call).
    flops = N * 2 * (2 * C * C * HW            # fused 1x1 convs
                     + HW * HW * C             # similarity
                     + HW * HW                 # row sums
                     + C * HW * HW             # spatial apply
                     + 2 * C * C * HW)         # gram + channel apply
    transcendentals = N * (HW * HW + C * C)
    bytes_accessed = 4 * (2 * N * C * HW + 2 * C * C + 2)

    kernel = functools.partial(_attention_incorporation_kernel, nb=nb, c=C)

    out = pl.pallas_call(
        kernel,
        out_shape=jax.ShapeDtypeStruct((N, C, HW), jnp.float32),
        grid_spec=pltpu.PrefetchScalarGridSpec(
            num_scalar_prefetch=0,
            grid=(N // nb,),
            in_specs=[
                pl.BlockSpec((nb, C, HW), lambda b: (b, 0, 0)),
                pl.BlockSpec((2 * C, C), lambda b: (0, 0)),
                pl.BlockSpec(memory_space=pltpu.MemorySpace.SMEM),
            ],
            out_specs=pl.BlockSpec((nb, C, HW), lambda b: (b, 0, 0)),
        ),
        compiler_params=pltpu.CompilerParams(
            dimension_semantics=("parallel",),
            vmem_limit_bytes=32 * 1024 * 1024,   # explicit: v7x has only 64 MiB VMEM
        ),
        cost_estimate=pl.CostEstimate(
            flops=flops, transcendentals=transcendentals,
            bytes_accessed=bytes_accessed),
    )(x, w_all, scales)

    return out.reshape(N, C, H, W)


def _reference(x_nchw, params):
    """Plain-JAX reference, literal translation of the PyTorch forward."""
    n, c, h, w = x_nchw.shape
    hw = h * w
    hp = lax.Precision.HIGHEST
    x1 = x_nchw.reshape(n, c, hw)
    wr1 = params["wr1"][:, :, 0, 0]
    wr2 = params["wr2"][:, :, 0, 0]
    wc = params["wc"][:, :, 0, 0]

    # Spatial attention
    r1 = jnp.einsum("kc,nci->nki", wr1, x1, precision=hp)          # (n, cr, hw)
    r2 = jnp.einsum("kc,nci->nki", wr2, x1, precision=hp)          # (n, cr, hw)
    s = jnp.einsum("nki,nkj->nij", r1, r2, precision=hp)           # (n, hw, hw)
    p = jax.nn.softmax(s, axis=2)
    m = jnp.einsum("dc,nci->ndi", wc, x1, precision=hp)            # (n, c, hw)
    spat = jnp.einsum("ndi,nij->ndj", m, p, precision=hp)          # (n, c, hw)
    spatial_out = x1 + params["scale_s"][0] * spat

    # Channel attention
    g = jnp.einsum("nci,ndi->ncd", x1, x1, precision=hp)           # (n, c, c)
    gp = jax.nn.softmax(g, axis=2)
    chan = jnp.einsum("ncd,ndi->nci", gp, x1, precision=hp)        # (n, c, hw)
    channel_out = x1 + params["scale_c"][0] * chan

    return (spatial_out + channel_out).reshape(n, c, h, w)


def _init_params(key, in_channels, reduction=8):
    cr = in_channels // reduction
    ks = jax.random.split(key, 5)
    fan = float(in_channels)
    return {
        "wr1": jax.random.normal(ks[0], (cr, in_channels, 1, 1), jnp.float32)
               / np.sqrt(fan),
        "wr2": jax.random.normal(ks[1], (cr, in_channels, 1, 1), jnp.float32)
               / np.sqrt(fan),
        "wc": jax.random.normal(ks[2], (in_channels, in_channels, 1, 1), jnp.float32)
              / np.sqrt(fan),
        # PyTorch initializes both scale parameters to 0; use nonzero values here
        # so the attention branches actually contribute to the checked output.
        "scale_s": 0.5 + 0.1 * jax.random.normal(ks[3], (1,), jnp.float32),
        "scale_c": 0.5 + 0.1 * jax.random.normal(ks[4], (1,), jnp.float32),
    }


if __name__ == "__main__":
    key = jax.random.PRNGKey(0)
    k_x, k_p = jax.random.split(key)

    # SpatialAttention uses reduction=8, so channels must be a multiple of 8.
    N, C, H, W = 2, 16, 16, 16
    x = jax.random.normal(k_x, (N, C, H, W), jnp.float32)
    params = _init_params(k_p, C)

    out = jax.block_until_ready(attention_incorporation(x, params))
    ref = jax.block_until_ready(_reference(x, params))

    assert out.shape == (N, C, H, W), out.shape
    np.testing.assert_allclose(np.asarray(out), np.asarray(ref),
                               rtol=1e-3, atol=1e-3)
    print("KERNEL_OK")
</pallas_src>

<mosaic_0001>
module attributes {stable_mosaic.version = 11 : i64} {
  func.func @_attention_incorporation_kernel(%arg0: i32, %arg1: memref<1x16x256xf32, #tpu.memory_space<vmem>>, %arg2: memref<32x16xf32, #tpu.memory_space<vmem>>, %arg3: memref<2xf32, #tpu.memory_space<smem>>, %arg4: memref<1x16x256xf32, #tpu.memory_space<vmem>>) attributes {dimension_semantics = [#tpu.dimension_semantics<parallel>], iteration_bounds = array<i64: 2>, scalar_prefetch = 0 : i64, scratch_operands = 0 : i64, tpu.core_type = #tpu.core_type<tc>, window_params = [{transform_indices = @transform_0, window_bounds = array<i64: 1, 16, 256>}, {pipeline_mode = #tpu.pipeline_mode<synchronous>, transform_indices = @transform_1, window_bounds = array<i64: 32, 16>}, {transform_indices = @transform_2, window_bounds = array<i64: 2>}, {transform_indices = @transform_3, window_bounds = array<i64: 1, 16, 256>}]} {
    %c0 = arith.constant 0 : index
    %c0_0 = arith.constant 0 : index
    %0 = vector.load %arg2[%c0, %c0_0] : memref<32x16xf32, #tpu.memory_space<vmem>>, vector<32x16xf32>
    %c0_1 = arith.constant 0 : index
    %1 = memref.load %arg3[%c0_1] : memref<2xf32, #tpu.memory_space<smem>>
    %c1 = arith.constant 1 : index
    %2 = memref.load %arg3[%c1] : memref<2xf32, #tpu.memory_space<smem>>
    %cst = arith.constant 1.000000e+00 : f32
    %3 = vector.broadcast %cst : f32 to vector<1x256xf32>
    %c0_2 = arith.constant 0 : index
    %c0_3 = arith.constant 0 : index
    %c0_4 = arith.constant 0 : index
    %4 = vector.load %arg1[%c0_2, %c0_3, %c0_4] : memref<1x16x256xf32, #tpu.memory_space<vmem>>, vector<1x16x256xf32>
    %5 = vector.shape_cast %4 : vector<1x16x256xf32> to vector<16x256xf32>
    %cst_5 = arith.constant dense<0.000000e+00> : vector<32x256xf32>
    %6 = tpu.matmul %0, %5, %cst_5 {dimension_numbers = #tpu.dot_dimension_numbers<[1], [0], [0], [1], [0, 0, 1, 1], [], []>} : vector<32x16xf32>, vector<16x256xf32>, vector<32x256xf32> -> vector<32x256xf32>
    %7 = vector.extract_strided_slice %6 {offsets = [0, 0], sizes = [16, 256], strides = [1, 1]} : vector<32x256xf32> to vector<16x256xf32>
    %8 = vector.extract_strided_slice %6 {offsets = [16, 0], sizes = [16, 256], strides = [1, 1]} : vector<32x256xf32> to vector<16x256xf32>
    %cst_6 = arith.constant dense<0.000000e+00> : vector<256x256xf32>
    %9 = tpu.matmul %7, %5, %cst_6 {dimension_numbers = #tpu.dot_dimension_numbers<[0], [0], [1], [1], [0, 1, 1, 1], [], []>} : vector<16x256xf32>, vector<16x256xf32>, vector<256x256xf32> -> vector<256x256xf32>
    %cst_7 = arith.constant dense<0xFF800000> : vector<256xf32>
    %10 = vector.multi_reduction <maximumf>, %9, %cst_7 [1] : vector<256x256xf32> to vector<256xf32>
    %11 = vector.shape_cast %10 : vector<256xf32> to vector<256x1xf32>
    %12 = vector.broadcast %11 : vector<256x1xf32> to vector<256x256xf32>
    %13 = arith.subf %9, %12 : vector<256x256xf32>
    %14 = math.exp %13 : vector<256x256xf32>
    %cst_8 = arith.constant dense<0.000000e+00> : vector<1x256xf32>
    %15 = tpu.matmul %3, %14, %cst_8 {dimension_numbers = #tpu.dot_dimension_numbers<[1], [1], [0], [0], [0, 0, 1, 0], [], []>} : vector<1x256xf32>, vector<256x256xf32>, vector<1x256xf32> -> vector<1x256xf32>
    %16 = tpu.reciprocal %15 : vector<1x256xf32> -> vector<1x256xf32>
    %17 = vector.broadcast %16 : vector<1x256xf32> to vector<16x256xf32>
    %18 = arith.mulf %8, %17 : vector<16x256xf32>
    %cst_9 = arith.constant dense<0.000000e+00> : vector<16x256xf32>
    %19 = tpu.matmul %18, %14, %cst_9 {dimension_numbers = #tpu.dot_dimension_numbers<[1], [0], [0], [1], [0, 0, 1, 1], [], []>} : vector<16x256xf32>, vector<256x256xf32>, vector<16x256xf32> -> vector<16x256xf32>
    %cst_10 = arith.constant dense<0.000000e+00> : vector<16x16xf32>
    %20 = tpu.matmul %5, %5, %cst_10 {dimension_numbers = #tpu.dot_dimension_numbers<[1], [1], [0], [0], [0, 0, 1, 0], [], []>} : vector<16x256xf32>, vector<16x256xf32>, vector<16x16xf32> -> vector<16x16xf32>
    %cst_11 = arith.constant dense<0xFF800000> : vector<16xf32>
    %21 = vector.multi_reduction <maximumf>, %20, %cst_11 [1] : vector<16x16xf32> to vector<16xf32>
    %22 = vector.shape_cast %21 : vector<16xf32> to vector<16x1xf32>
    %23 = vector.broadcast %22 : vector<16x1xf32> to vector<16x16xf32>
    %24 = arith.subf %20, %23 : vector<16x16xf32>
    %25 = math.exp %24 : vector<16x16xf32>
    %cst_12 = arith.constant dense<0.000000e+00> : vector<16xf32>
    %26 = vector.multi_reduction <add>, %25, %cst_12 [1] : vector<16x16xf32> to vector<16xf32>
    %27 = vector.shape_cast %26 : vector<16xf32> to vector<16x1xf32>
    %28 = tpu.reciprocal %27 : vector<16x1xf32> -> vector<16x1xf32>
    %29 = vector.broadcast %28 : vector<16x1xf32> to vector<16x16xf32>
    %30 = arith.mulf %25, %29 : vector<16x16xf32>
    %cst_13 = arith.constant dense<0.000000e+00> : vector<16x256xf32>
    %31 = tpu.matmul %30, %5, %cst_13 {dimension_numbers = #tpu.dot_dimension_numbers<[1], [0], [0], [1], [0, 0, 1, 1], [], []>} : vector<16x16xf32>, vector<16x256xf32>, vector<16x256xf32> -> vector<16x256xf32>
    %cst_14 = arith.constant 2.000000e+00 : f32
    %32 = vector.broadcast %cst_14 : f32 to vector<16x256xf32>
    %33 = arith.mulf %32, %5 : vector<16x256xf32>
    %34 = vector.broadcast %1 : f32 to vector<16x256xf32>
    %35 = arith.mulf %34, %19 : vector<16x256xf32>
    %36 = arith.addf %33, %35 : vector<16x256xf32>
    %37 = vector.broadcast %2 : f32 to vector<16x256xf32>
    %38 = arith.mulf %37, %31 : vector<16x256xf32>
    %39 = arith.addf %36, %38 : vector<16x256xf32>
    %c0_15 = arith.constant 0 : index
    %c0_16 = arith.constant 0 : index
    %c0_17 = arith.constant 0 : index
    %40 = vector.load %arg4[%c0_15, %c0_16, %c0_17] : memref<1x16x256xf32, #tpu.memory_space<vmem>>, vector<1x16x256xf32>
    %41 = vector.shape_cast %40 : vector<1x16x256xf32> to vector<16x256xf32>
    %42 = vector.shape_cast %39 : vector<16x256xf32> to vector<1x16x256xf32>
    tpu.vector_store %arg4[%c0_15, %c0_16, %c0_17], %42 {strides = array<i32>} : memref<1x16x256xf32, #tpu.memory_space<vmem>>, vector<1x16x256xf32>,
    return
  }
  func.func @transform_0(%arg0: i32) -> (i32, i32, i32) {
    %c0_i32 = arith.constant 0 : i32
    %c0_i32_0 = arith.constant 0 : i32
    %c0_i32_1 = arith.constant 0 : i32
    return %arg0, %c0_i32, %c0_i32_0 : i32, i32, i32
  }
  func.func @transform_1(%arg0: i32) -> (i32, i32) {
    %c0_i32 = arith.constant 0 : i32
    %c0_i32_0 = arith.constant 0 : i32
    %c0_i32_1 = arith.constant 0 : i32
    return %c0_i32, %c0_i32_0 : i32, i32
  }
  func.func @transform_2(%arg0: i32) -> i32 {
    %c0_i32 = arith.constant 0 : i32
    %c0_i32_0 = arith.constant 0 : i32
    return %c0_i32 : i32
  }
  func.func @transform_3(%arg0: i32) -> (i32, i32, i32) {
    %c0_i32 = arith.constant 0 : i32
    %c0_i32_0 = arith.constant 0 : i32
    %c0_i32_1 = arith.constant 0 : i32
    return %arg0, %c0_i32, %c0_i32_0 : i32, i32, i32
  }
}

</mosaic_0001>

<llo_original>
// kernel: tpu_custom_call.1
$region0: #{tpu_custom_call.1}
  #allocation0 [shape = 'u32[]', space=smem, size = 0x4, offset = 0x4, fixed_abs, tag = 'smem constant byte address 0x4 - core index']
  #allocation1 [shape = 'u32[144,128]{1,0:T(1,128)}', space=vmem, size = 0x12000, scoped, tag = 'internal scratch']
  %s0 = inlined_call_operand.hbm [shape: f32[2,16,256], index: 0, kind: input, shape index: {}]
  %s1 = inlined_call_operand.vmem [shape: f32[32,16], index: 1, kind: input, shape index: {}]
  %s2 = inlined_call_operand.vmem [shape: f32[2], index: 2, kind: input, shape index: {}]
  %s3 = inlined_call_operand.hbm [shape: f32[2,16,256], index: 3, kind: output, shape index: {}]
  %s4 = sld [smem:[#allocation0]]
  $region53: #{tpu_custom_call.1} parent=0
    _
  %s6 = ssub.s32 1, %s4
  %s7 = scalar_select 0, %s6, %s4
  $region1: #{tpu_custom_call.1} parent=0
    #allocation2 [shape = 'u8[32768]{0}', space=vmem, size = 0x8000, scoped, tag = 'input window, operand 0']
    #allocation3 [shape = 's32[2]{0}', space=sflag, size = 0x8, scoped, tag = 'scoped memory for tpu_custom_call.1']
    #allocation4 [shape = 's32[2]{0}', space=sflag, size = 0x8, scoped, tag = 'scoped memory for tpu_custom_call.1']
    #allocation5 [shape = 's32[2]{0}', space=sflag, size = 0x8, scoped, tag = 'scoped memory for tpu_custom_call.1']
    #allocation6 [shape = 'u8[512]{0}', space=smem, size = 0x200, scoped, tag = 'input window, operand 2, single buffered']
    #allocation7 [shape = 'u8[32768]{0}', space=vmem, size = 0x8000, scoped, tag = 'output window, operand 0']
    %8 = vsyncpa [#allocation3], 0
    %s9 = scalar_lea.sflag [#allocation3], 1
    %10 = vsyncpa %s9, 0
    %11 = vsyncpa [#allocation5], 0
    %12 = vsyncpa [#allocation4], 0
    %s13 = scalar_lea.sflag [#allocation4], 1
    %14 = vsyncpa %s13, 0
    loop: start=0, step=1, limit=4
    $region2: #{tpu_custom_call.1} parent=1 // loop_pre_header
      _
    $region3: #{tpu_custom_call.1} parent=1 // loop_header
      %s16 = sphi 0, %s20
      %p17 = scmp.ge.s32.totalorder %s16, 4
      %s26 = sphi 0, %s28
      %s29 = sphi 0, %s26
      %s30 = sphi 0, %s29
      %s46 = sphi 0, %s30
      %s50 = sphi 0, %s50
      %s52 = sphi 0, %s50
      %s53 = sphi 0, %s52
      %s67 = sphi 0, %s53
      %s71 = sphi 0, %s71
      %s73 = sphi 0, %s71
      %s74 = sphi 0, %s73
      %s88 = sphi 0, %s74
      %s94 = sphi 0, %s96
      %s97 = sphi 0, %s94
      %s98 = sphi 0, %s97
      %s114 = sphi 0, %s98
    $region4: #{tpu_custom_call.1} parent=1 // loop_header_branch
      %19 = sbr.rel (%p17) target = $region8
    $region5: #{tpu_custom_call.1} parent=1 // loop_body
      %s21 = ssub.s32 %s16, 1
      %s22 = ssub.s32 %s16, 2
      %s23 = sadd.s32 %s16, 1
      %s24 = ssub.s32 %s16, %s23
      %p25 = scmp.eq.s32.totalorder %s24, 0
      %s27 = sadd.s32 %s26, 1
      %s28 = scalar_select %p25, %s26, %s27
      %p31 = pneg %p25
      %p32 = scmp.eq.s32.totalorder %s16, 1
      %p33 = por %p31, %p32
      %p34 = scmp.ne.s32.totalorder %s26, %s29
      %p35 = scmp.eq.s32.totalorder %s16, 0
      %p36 = por %p34, %p35
      %p37 = scmp.ne.s32.totalorder %s26, %s29
      %p38 = scmp.eq.s32.totalorder %s21, 1
      %p39 = por %p37, %p38
      %p40 = scmp.ne.s32.totalorder %s29, %s30
      %p41 = scmp.eq.s32.totalorder %s21, 0
      %p42 = por %p40, %p41
      %p43 = scmp.ne.s32.totalorder %s29, %s30
      %p44 = scmp.eq.s32.totalorder %s22, 1
      %p45 = por %p43, %p44
      %p47 = scmp.ne.s32.totalorder %s30, %s46
      %p48 = scmp.eq.s32.totalorder %s22, 0
      %p49 = por %p47, %p48
      %s51 = sadd.s32 %s50, 1
      %p54 = scmp.eq.s32.totalorder %s16, 1
      %p55 = scmp.ne.s32.totalorder %s50, %s52
      %p56 = scmp.eq.s32.totalorder %s16, 0
      %p57 = por %p55, %p56
      %p58 = scmp.ne.s32.totalorder %s50, %s52
      %p59 = scmp.eq.s32.totalorder %s21, 1
      %p60 = por %p58, %p59
      %p61 = scmp.ne.s32.totalorder %s52, %s53
      %p62 = scmp.eq.s32.totalorder %s21, 0
      %p63 = por %p61, %p62
      %p64 = scmp.ne.s32.totalorder %s52, %s53
      %p65 = scmp.eq.s32.totalorder %s22, 1
      %p66 = por %p64, %p65
      %p68 = scmp.ne.s32.totalorder %s53, %s67
      %p69 = scmp.eq.s32.totalorder %s22, 0
      %p70 = por %p68, %p69
      %s72 = sadd.s32 %s71, 1
      %p75 = scmp.eq.s32.totalorder %s16, 1
      %p76 = scmp.ne.s32.totalorder %s71, %s73
      %p77 = scmp.eq.s32.totalorder %s16, 0
      %p78 = por %p76, %p77
      %p79 = scmp.ne.s32.totalorder %s71, %s73
      %p80 = scmp.eq.s32.totalorder %s21, 1
      %p81 = por %p79, %p80
      %p82 = scmp.ne.s32.totalorder %s73, %s74
      %p83 = scmp.eq.s32.totalorder %s21, 0
      %p84 = por %p82, %p83
      %p85 = scmp.ne.s32.totalorder %s73, %s74
      %p86 = scmp.eq.s32.totalorder %s22, 1
      %p87 = por %p85, %p86
      %p89 = scmp.ne.s32.totalorder %s74, %s88
      %p90 = scmp.eq.s32.totalorder %s22, 0
      %p91 = por %p89, %p90
      %s92 = ssub.s32 %s16, %s23
      %p93 = scmp.eq.s32.totalorder %s92, 0
      %s95 = sadd.s32 %s94, 1
      %s96 = scalar_select %p93, %s94, %s95
      %p99 = pneg %p93
      %p100 = scmp.eq.s32.totalorder %s16, 1
      %p101 = por %p99, %p100
      %p102 = scmp.ne.s32.totalorder %s94, %s97
      %p103 = scmp.eq.s32.totalorder %s16, 0
      %p104 = por %p102, %p103
      %p105 = scmp.ne.s32.totalorder %s94, %s97
      %p106 = scmp.eq.s32.totalorder %s21, 1
      %p107 = por %p105, %p106
      %p108 = scmp.ne.s32.totalorder %s97, %s98
      %p109 = scmp.eq.s32.totalorder %s21, 0
      %p110 = por %p108, %p109
      %p111 = scmp.ne.s32.totalorder %s97, %s98
      %p112 = scmp.eq.s32.totalorder %s22, 1
      %p113 = por %p111, %p112
      %p115 = scmp.ne.s32.totalorder %s98, %s114
      %p116 = scmp.eq.s32.totalorder %s22, 0
      %p117 = por %p115, %p116
      %p118 = scmp.le.s32.totalorder 1, %s16
      %p119 = scmp.lt.s32.totalorder %s16, 3
      %p120 = pnand %p118, %p119
      %p121 = pneg %p120
      // Predicated region
      $region9: #{tpu_custom_call.1} parent=5 // pred_check
        _
      $region10: #{tpu_custom_call.1} parent=5 // pred_check_branch
        %123 = sbr.rel (%p120) target = $region12
      $region11: #{tpu_custom_call.1} parent=5 // pred_region
        %s124 = ssub.s32 %s16, 1
        // Predicated region
        $region13: #{tpu_custom_call.1} parent=11 // pred_check
          %p125 = pneg %p63
        $region14: #{tpu_custom_call.1} parent=11 // pred_check_branch
          %127 = sbr.rel (%p125) target = $region16
        $region15: #{tpu_custom_call.1} parent=11 // pred_region
          _
        $region16: #{tpu_custom_call.1} parent=11 // pred_fallthru
          _
        // Predicated region
        $region17: #{tpu_custom_call.1} parent=11 // pred_check
          %p128 = pneg %p84
        $region18: #{tpu_custom_call.1} parent=11 // pred_check_branch
          %130 = sbr.rel (%p128) target = $region20
        $region19: #{tpu_custom_call.1} parent=11 // pred_region
          %s132 = ssub.s32 16, 16
          %133 = vsyncadd [#allocation5], %s132
          %s135 = sshll.u32 %s2, 4
          %s136 = int_to_ptr.vmem [resolvable:$true] %s135
          %138 = dma.vmem_to_smem %s136, 16, [#allocation6], [#allocation5]
        $region20: #{tpu_custom_call.1} parent=11 // pred_fallthru
          _
      $region12: #{tpu_custom_call.1} parent=5 // pred_fallthru
        _
      %p139 = scmp.lt.s32.totalorder %s16, 2
      // Predicated region
      $region21: #{tpu_custom_call.1} parent=5 // pred_check
        %p140 = pneg %p139
      $region22: #{tpu_custom_call.1} parent=5 // pred_check_branch
        %142 = sbr.rel (%p140) target = $region24
      $region23: #{tpu_custom_call.1} parent=5 // pred_region
        // Predicated region
        $region25: #{tpu_custom_call.1} parent=23 // pred_check
          %p143 = pneg %p36
        $region26: #{tpu_custom_call.1} parent=23 // pred_check_branch
          %145 = sbr.rel (%p143) target = $region28
        $region27: #{tpu_custom_call.1} parent=23 // pred_region
          %s146 = sand.u32 %s26, 1
          %s147 = scalar_lea.sflag [#allocation3], %s146
          %s148 = sand.u32 %s26, 1
          %s149 = smul.addr %s148, 32
          %s150 = scalar_lea.vmem [#allocation2], %s149
          %s152 = ssub.s32 512, 512
          %153 = vsyncadd %s147, %s152
          %s154 = smul.addr %s16, 4
          %s155 = smul.addr %s154, 128
          %s156 = scalar_lea.hbm %s0, %s155
          %s157 = sshll.u32 %s150, 4
          %s158 = int_to_ptr.vmem [resolvable:$true] %s157
          %163 = dma.hbm_to_vmem [thread:$0]  %s156, 512, %s158, %s147, 256, 256, 16
        $region28: #{tpu_custom_call.1} parent=23 // pred_fallthru
          _
      $region24: #{tpu_custom_call.1} parent=5 // pred_fallthru
        _
      %p164 = scmp.le.s32.totalorder 1, %s16
      %p165 = scmp.lt.s32.totalorder %s16, 3
      %p166 = pnand %p164, %p165
      %p167 = pneg %p166
      // Predicated region
      $region29: #{tpu_custom_call.1} parent=5 // pred_check
        _
      $region30: #{tpu_custom_call.1} parent=5 // pred_check_branch
        %169 = sbr.rel (%p166) target = $region32
      $region31: #{tpu_custom_call.1} parent=5 // pred_region
        %s170 = ssub.s32 %s16, 1
        %s171 = sand.u32 %s29, 1
        %s172 = scalar_lea.sflag [#allocation3], %s171
        %s173 = sand.u32 %s29, 1
        %s174 = smul.addr %s173, 32
        %s175 = scalar_lea.vmem [#allocation2], %s174
        // Predicated region
        $region33: #{tpu_custom_call.1} parent=31 // pred_check
          %p176 = pneg %p42
        $region34: #{tpu_custom_call.1} parent=31 // pred_check_branch
          %178 = sbr.rel (%p176) target = $region36
        $region35: #{tpu_custom_call.1} parent=31 // pred_region
          %179 = dma.done %s172, 512
        $region36: #{tpu_custom_call.1} parent=31 // pred_fallthru
          _
        // Predicated region
        $region37: #{tpu_custom_call.1} parent=31 // pred_check
          %p180 = pneg %p84
        $region38: #{tpu_custom_call.1} parent=31 // pred_check_branch
          %182 = sbr.rel (%p180) target = $region40
        $region39: #{tpu_custom_call.1} parent=31 // pred_region
          %183 = dma.done [#allocation5], 16
        $region40: #{tpu_custom_call.1} parent=31 // pred_fallthru
          _
        %184 = sfence
        %s185 = sand.u32 %s29, 1
        %s186 = scalar_lea.sflag [#allocation3], %s185
        %s187 = sand.u32 %s29, 1
        %s188 = smul.addr %s187, 32
        %s189 = scalar_lea.vmem [#allocation2], %s188
        %p190 = pneg %p42
        %p191 = pneg %p39
        %p192 = pneg %p63
        %p193 = pneg %p60
        %p194 = pneg %p84
        %p195 = pneg %p81
        %p196 = pneg %p110
        %p197 = pneg %p107
        %s198 = sand.u32 %s97, 1
        %s199 = scalar_lea.sflag [#allocation4], %s198
        %s200 = sand.u32 %s97, 1
        %s201 = smul.addr %s200, 32
        %s202 = scalar_lea.vmem [#allocation7], %s201
        %v203 = vld [vmem:[%s1] sm:$0xff]
        %v204 = vld [vmem:[%s1 + $0x8] sm:$0xff]
        %v205 = vld [vmem:[%s1 + $0x10] sm:$0xff]
        %v206 = vld [vmem:[%s1 + $0x18] sm:$0xff]
        %s207 = sld [smem:[#allocation6]]
        %s208 = sld [smem:[#allocation6 + $0x1]]
        %v209 = vld [vmem:[%s175] sm:$0xff]
        %v210 = vld [vmem:[%s175 + $0x8] sm:$0xff]
        %v211 = vld [vmem:[%s175 + $0x10] sm:$0xff]
        %v212 = vld [vmem:[%s175 + $0x18] sm:$0xff]
        %vm213 = vcmask 130048
        %v215 = vsel %vm213, %v203, 0
        %v218 = vsel %vm213, %v204, 0
        %v221 = vsel %vm213, %v205, 0
        %v224 = vsel %vm213, %v206, 0
        %226 = vmatprep.subr.mxu0 %v210
        %227 = vmatpush1.msra.mxu0 %v209
        %228 = vmatprep.subr.mxu0 %v212
        %229 = vmatpush1.msra.mxu0 %v211
        %230 = vmatprep.subr.mxu0 0.0
        %231 = vmatpush1.msra.mxu0 0.0
        %232 = vmatprep.subr.mxu0 0.0
        %233 = vmatpush1.msra.mxu0 0.0
        %234 = vmatprep.subr.mxu0 0.0
        %235 = vmatpush1.msra.mxu0 0.0
        %236 = vmatprep.subr.mxu0 0.0
        %237 = vmatpush1.msra.mxu0 0.0
        %238 = vmatprep.subr.mxu0 0.0
        %239 = vmatpush1.msra.mxu0 0.0
        %240 = vmatprep.subr.mxu0 0.0
        %241 = vmatpush1.msra.mxu0 0.0
        %242 = vmatprep.subr.mxu0 0.0
        %243 = vmatpush1.msra.mxu0 0.0
        %244 = vmatprep.subr.mxu0 0.0
        %245 = vmatpush1.msra.mxu0 0.0
        %246 = vmatprep.subr.mxu0 0.0
        %247 = vmatpush1.msra.mxu0 0.0
        %248 = vmatprep.subr.mxu0 0.0
        %249 = vmatpush1.msra.mxu0 0.0
        %250 = vmatprep.subr.mxu0 0.0
        %251 = vmatpush1.msra.mxu0 0.0
        %252 = vmatprep.subr.mxu0 0.0
        %253 = vmatpush1.msra.mxu0 0.0
        %254 = vmatprep.subr.mxu0 0.0
        %255 = vmatpush1.msra.mxu0 0.0
        %256 = vmatprep.subr.mxu0 0.0
        %257 = vmatpush1.msra.mxu0 0.0
        %258 = vmatprep.subr.mxu0 0.0
        %259 = vmatpush1.msra.mxu0 0.0
        %260 = vmatprep.subr.mxu0 0.0
        %261 = vmatpush1.msra.mxu0 0.0
        %262 = vmatprep.subr.mxu0 0.0
        %263 = vmatpush1.msra.mxu0 0.0
        %264 = vmatprep.subr.mxu0 0.0
        %265 = vmatpush1.msra.mxu0 0.0
        %266 = vmatprep.subr.mxu0 0.0
        %267 = vmatpush1.msra.mxu0 0.0
        %268 = vmatprep.subr.mxu0 0.0
        %269 = vmatpush1.msra.mxu0 0.0
        %270 = vmatprep.subr.mxu0 0.0
        %271 = vmatpush1.msra.mxu0 0.0
        %272 = vmatprep.subr.mxu0 0.0
        %273 = vmatpush1.msra.mxu0 0.0
        %274 = vmatprep.subr.mxu0 0.0
        %275 = vmatpush1.msra.mxu0 0.0
        %276 = vmatprep.subr.mxu0 0.0
        %277 = vmatpush1.msra.mxu0 0.0
        %278 = vmatprep.subr.mxu0 0.0
        %279 = vmatpush1.msra.mxu0 0.0
        %280 = vmatprep.subr.mxu0 0.0
        %281 = vmatpush1.msra.mxu0 0.0
        %282 = vmatprep.subr.mxu0 0.0
        %283 = vmatpush1.msra.mxu0 0.0
        %284 = vmatprep.subr.mxu0 0.0
        %285 = vmatpush1.msra.mxu0 0.0
        %286 = vmatprep.subr.mxu0 0.0
        %287 = vmatpush1.msra.mxu0 0.0
        %288 = vmatprep.subr.mxu0 0.0
        %289 = vmatpush1.msra.mxu0 0.0
        %290 = vmatprep.mubr.f32.mxu0 0.0
        %291 = vmatmul.mubr.f32.gmra.mrb[0].mxu0 %v215
        %v292 = vpop.f32.mrb[0].mxu0
        %v293 = vadd.f32 0.0, %v292
        %v294 = vpop.f32.mrb[0].mxu0
        %v295 = vadd.f32 0.0, %v294
        %296 = vmatprep.mubr.f32.mxu0 0.0
        %297 = vmatmul.mubr.f32.gmra.mrb[0].mxu0 %v218
        %v298 = vpop.f32.mrb[0].mxu0
        %v299 = vadd.f32 0.0, %v298
        %v300 = vpop.f32.mrb[0].mxu0
        %v301 = vadd.f32 0.0, %v300
        %302 = vmatprep.mubr.f32.mxu0 0.0
        %303 = vmatmul.mubr.f32.gmra.mrb[0].mxu0 %v221
        %v304 = vpop.f32.mrb[0].mxu0
        %v305 = vadd.f32 0.0, %v304
        %v306 = vpop.f32.mrb[0].mxu0
        %v307 = vadd.f32 0.0, %v306
        %308 = vmatprep.mubr.f32.mxu0 0.0
        %309 = vmatmul.mubr.f32.gmra.mrb[0].mxu0 %v224
        %v310 = vpop.f32.mrb[0].mxu0
        %v311 = vadd.f32 0.0, %v310
        %v312 = vpop.f32.mrb[0].mxu0
        %v313 = vadd.f32 0.0, %v312
        %314 = vdwg.mxu0
        %315 = vxpose.xlu0.b32.start [1/16] %v293, 128
        %316 = vxpose.xlu0.b32.cont [2/16] %v299, 128
        %317 = vxpose.xlu0.b32.cont [3/16] 0.0, 128
        %318 = vxpose.xlu0.b32.cont [4/16] 0.0, 128
        %319 = vxpose.xlu0.b32.cont [5/16] 0.0, 128
        %320 = vxpose.xlu0.b32.cont [6/16] 0.0, 128
        %321 = vxpose.xlu0.b32.cont [7/16] 0.0, 128
        %322 = vxpose.xlu0.b32.cont [8/16] 0.0, 128
        %323 = vxpose.xlu0.b32.cont [9/16] 0.0, 128
        %324 = vxpose.xlu0.b32.cont [10/16] 0.0, 128
        %325 = vxpose.xlu0.b32.cont [11/16] 0.0, 128
        %326 = vxpose.xlu0.b32.cont [12/16] 0.0, 128
        %327 = vxpose.xlu0.b32.cont [13/16] 0.0, 128
        %328 = vxpose.xlu0.b32.cont [14/16] 0.0, 128
        %329 = vxpose.xlu0.b32.cont [15/16] 0.0, 128
        %330 = vxpose.xlu0.b32.end [16/16] 0.0, 128
        %v331 = vpop.trf.xlu0
        %v332 = vpop.trf.xlu0
        %v333 = vpop.trf.xlu0
        %v334 = vpop.trf.xlu0
        %v335 = vpop.trf.xlu0
        %v336 = vpop.trf.xlu0
        %v337 = vpop.trf.xlu0
        %v338 = vpop.trf.xlu0
        %v339 = vpop.trf.xlu0
        %v340 = vpop.trf.xlu0
        %v341 = vpop.trf.xlu0
        %v342 = vpop.trf.xlu0
        %v343 = vpop.trf.xlu0
        %v344 = vpop.trf.xlu0
        %v345 = vpop.trf.xlu0
        %v346 = vpop.trf.xlu0
        %347 = vxpose.xlu0.b32.start [1/16] %v295, 128
        %348 = vxpose.xlu0.b32.cont [2/16] %v301, 128
        %349 = vxpose.xlu0.b32.cont [3/16] 0.0, 128
        %350 = vxpose.xlu0.b32.cont [4/16] 0.0, 128
        %351 = vxpose.xlu0.b32.cont [5/16] 0.0, 128
        %352 = vxpose.xlu0.b32.cont [6/16] 0.0, 128
        %353 = vxpose.xlu0.b32.cont [7/16] 0.0, 128
        %354 = vxpose.xlu0.b32.cont [8/16] 0.0, 128
        %355 = vxpose.xlu0.b32.cont [9/16] 0.0, 128
        %356 = vxpose.xlu0.b32.cont [10/16] 0.0, 128
        %357 = vxpose.xlu0.b32.cont [11/16] 0.0, 128
        %358 = vxpose.xlu0.b32.cont [12/16] 0.0, 128
        %359 = vxpose.xlu0.b32.cont [13/16] 0.0, 128
        %360 = vxpose.xlu0.b32.cont [14/16] 0.0, 128
        %361 = vxpose.xlu0.b32.cont [15/16] 0.0, 128
        %362 = vxpose.xlu0.b32.end [16/16] 0.0, 128
        %v363 = vpop.trf.xlu0
        %v364 = vpop.trf.xlu0
        %v365 = vpop.trf.xlu0
        %v366 = vpop.trf.xlu0
        %v367 = vpop.trf.xlu0
        %v368 = vpop.trf.xlu0
        %v369 = vpop.trf.xlu0
        %v370 = vpop.trf.xlu0
        %v371 = vpop.trf.xlu0
        %v372 = vpop.trf.xlu0
        %v373 = vpop.trf.xlu0
        %v374 = vpop.trf.xlu0
        %v375 = vpop.trf.xlu0
        %v376 = vpop.trf.xlu0
        %v377 = vpop.trf.xlu0
        %v378 = vpop.trf.xlu0
        %v380 = vsel %vm213, %v331, 0
        %v383 = vsel %vm213, %v332, 0
        %v386 = vsel %vm213, %v333, 0
        %v389 = vsel %vm213, %v334, 0
        %v392 = vsel %vm213, %v335, 0
        %v395 = vsel %vm213, %v336, 0
        %v398 = vsel %vm213, %v337, 0
        %v401 = vsel %vm213, %v338, 0
        %v404 = vsel %vm213, %v339, 0
        %v407 = vsel %vm213, %v340, 0
        %v410 = vsel %vm213, %v341, 0
        %v413 = vsel %vm213, %v342, 0
        %v416 = vsel %vm213, %v343, 0
        %v419 = vsel %vm213, %v344, 0
        %v422 = vsel %vm213, %v345, 0
        %v425 = vsel %vm213, %v346, 0
        %v428 = vsel %vm213, %v363, 0
        %v431 = vsel %vm213, %v364, 0
        %v434 = vsel %vm213, %v365, 0
        %v437 = vsel %vm213, %v366, 0
        %v440 = vsel %vm213, %v367, 0
        %v443 = vsel %vm213, %v368, 0
        %v446 = vsel %vm213, %v369, 0
        %v449 = vsel %vm213, %v370, 0
        %v452 = vsel %vm213, %v371, 0
        %v455 = vsel %vm213, %v372, 0
        %v458 = vsel %vm213, %v373, 0
        %v461 = vsel %vm213, %v374, 0
        %v464 = vsel %vm213, %v375, 0
        %v467 = vsel %vm213, %v376, 0
        %v470 = vsel %vm213, %v377, 0
        %v473 = vsel %vm213, %v378, 0
        %475 = vmatprep.subr.mxu0 %v210
        %476 = vmatpush1.msra.mxu0 %v209
        %477 = vmatprep.subr.mxu0 %v212
        %478 = vmatpush1.msra.mxu0 %v211
        %479 = vmatprep.subr.mxu0 0.0
        %480 = vmatpush1.msra.mxu0 0.0
        %481 = vmatprep.subr.mxu0 0.0
        %482 = vmatpush1.msra.mxu0 0.0
        %483 = vmatprep.subr.mxu0 0.0
        %484 = vmatpush1.msra.mxu0 0.0
        %485 = vmatprep.subr.mxu0 0.0
        %486 = vmatpush1.msra.mxu0 0.0
        %487 = vmatprep.subr.mxu0 0.0
        %488 = vmatpush1.msra.mxu0 0.0
        %489 = vmatprep.subr.mxu0 0.0
        %490 = vmatpush1.msra.mxu0 0.0
        %491 = vmatprep.subr.mxu0 0.0
        %492 = vmatpush1.msra.mxu0 0.0
        %493 = vmatprep.subr.mxu0 0.0
        %494 = vmatpush1.msra.mxu0 0.0
        %495 = vmatprep.subr.mxu0 0.0
        %496 = vmatpush1.msra.mxu0 0.0
        %497 = vmatprep.subr.mxu0 0.0
        %498 = vmatpush1.msra.mxu0 0.0
        %499 = vmatprep.subr.mxu0 0.0
        %500 = vmatpush1.msra.mxu0 0.0
        %501 = vmatprep.subr.mxu0 0.0
        %502 = vmatpush1.msra.mxu0 0.0
        %503 = vmatprep.subr.mxu0 0.0
        %504 = vmatpush1.msra.mxu0 0.0
        %505 = vmatprep.subr.mxu0 0.0
        %506 = vmatpush1.msra.mxu0 0.0
        %507 = vmatprep.subr.mxu0 0.0
        %508 = vmatpush1.msra.mxu0 0.0
        %509 = vmatprep.subr.mxu0 0.0
        %510 = vmatpush1.msra.mxu0 0.0
        %511 = vmatprep.subr.mxu0 0.0
        %512 = vmatpush1.msra.mxu0 0.0
        %513 = vmatprep.subr.mxu0 0.0
        %514 = vmatpush1.msra.mxu0 0.0
        %515 = vmatprep.subr.mxu0 0.0
        %516 = vmatpush1.msra.mxu0 0.0
        %517 = vmatprep.subr.mxu0 0.0
        %518 = vmatpush1.msra.mxu0 0.0
        %519 = vmatprep.subr.mxu0 0.0
        %520 = vmatpush1.msra.mxu0 0.0
        %521 = vmatprep.subr.mxu0 0.0
        %522 = vmatpush1.msra.mxu0 0.0
        %523 = vmatprep.subr.mxu0 0.0
        %524 = vmatpush1.msra.mxu0 0.0
        %525 = vmatprep.subr.mxu0 0.0
        %526 = vmatpush1.msra.mxu0 0.0
        %527 = vmatprep.subr.mxu0 0.0
        %528 = vmatpush1.msra.mxu0 0.0
        %529 = vmatprep.subr.mxu0 0.0
        %530 = vmatpush1.msra.mxu0 0.0
        %531 = vmatprep.subr.mxu0 0.0
        %532 = vmatpush1.msra.mxu0 0.0
        %533 = vmatprep.subr.mxu0 0.0
        %534 = vmatpush1.msra.mxu0 0.0
        %535 = vmatprep.subr.mxu0 0.0
        %536 = vmatpush1.msra.mxu0 0.0
        %537 = vmatprep.subr.mxu0 0.0
        %538 = vmatpush1.msra.mxu0 0.0
        %539 = vmatprep.mubr.f32.mxu0 0.0
        %540 = vmatmul.mubr.f32.gmra.mrb[0].mxu0 %v380
        %v541 = vpop.f32.mrb[0].mxu0
        %v542 = vadd.f32 0.0, %v541
        %v543 = vpop.f32.mrb[0].mxu0
        %v544 = vadd.f32 0.0, %v543
        %545 = vmatprep.mubr.f32.mxu0 0.0
        %546 = vmatmul.mubr.f32.gmra.mrb[0].mxu0 %v383
        %v547 = vpop.f32.mrb[0].mxu0
        %v548 = vadd.f32 0.0, %v547
        %v549 = vpop.f32.mrb[0].mxu0
        %v550 = vadd.f32 0.0, %v549
        %551 = vmatprep.mubr.f32.mxu0 0.0
        %552 = vmatmul.mubr.f32.gmra.mrb[0].mxu0 %v386
        %v553 = vpop.f32.mrb[0].mxu0
        %v554 = vadd.f32 0.0, %v553
        %v555 = vpop.f32.mrb[0].mxu0
        %v556 = vadd.f32 0.0, %v555
        %557 = vmatprep.mubr.f32.mxu0 0.0
        %558 = vmatmul.mubr.f32.gmra.mrb[0].mxu0 %v389
        %v559 = vpop.f32.mrb[0].mxu0
        %v560 = vadd.f32 0.0, %v559
        %v561 = vpop.f32.mrb[0].mxu0
        %v562 = vadd.f32 0.0, %v561
        %563 = vmatprep.mubr.f32.mxu0 0.0
        %564 = vmatmul.mubr.f32.gmra.mrb[0].mxu0 %v392
        %v565 = vpop.f32.mrb[0].mxu0
        %v566 = vadd.f32 0.0, %v565
        %v567 = vpop.f32.mrb[0].mxu0
        %v568 = vadd.f32 0.0, %v567
        %569 = vmatprep.mubr.f32.mxu0 0.0
        %570 = vmatmul.mubr.f32.gmra.mrb[0].mxu0 %v395
        %v571 = vpop.f32.mrb[0].mxu0
        %v572 = vadd.f32 0.0, %v571
        %v573 = vpop.f32.mrb[0].mxu0
        %v574 = vadd.f32 0.0, %v573
        %575 = vmatprep.mubr.f32.mxu0 0.0
        %576 = vmatmul.mubr.f32.gmra.mrb[0].mxu0 %v398
        %v577 = vpop.f32.mrb[0].mxu0
        %v578 = vadd.f32 0.0, %v577
        %v579 = vpop.f32.mrb[0].mxu0
        %v580 = vadd.f32 0.0, %v579
        %581 = vmatprep.mubr.f32.mxu0 0.0
        %582 = vmatmul.mubr.f32.gmra.mrb[0].mxu0 %v401
        %v583 = vpop.f32.mrb[0].mxu0
        %v584 = vadd.f32 0.0, %v583
        %v585 = vpop.f32.mrb[0].mxu0
        %v586 = vadd.f32 0.0, %v585
        %587 = vmatprep.mubr.f32.mxu0 0.0
        %588 = vmatmul.mubr.f32.gmra.mrb[0].mxu0 %v404
        %v589 = vpop.f32.mrb[0].mxu0
        %v590 = vadd.f32 0.0, %v589
        %v591 = vpop.f32.mrb[0].mxu0
        %v592 = vadd.f32 0.0, %v591
        %593 = vmatprep.mubr.f32.mxu0 0.0
        %594 = vmatmul.mubr.f32.gmra.mrb[0].mxu0 %v407
        %v595 = vpop.f32.mrb[0].mxu0
        %v596 = vadd.f32 0.0, %v595
        %v597 = vpop.f32.mrb[0].mxu0
        %v598 = vadd.f32 0.0, %v597
        %599 = vmatprep.mubr.f32.mxu0 0.0
        %600 = vmatmul.mubr.f32.gmra.mrb[0].mxu0 %v410
        %v601 = vpop.f32.mrb[0].mxu0
        %v602 = vadd.f32 0.0, %v601
        %v603 = vpop.f32.mrb[0].mxu0
        %v604 = vadd.f32 0.0, %v603
        %605 = vmatprep.mubr.f32.mxu0 0.0
        %606 = vmatmul.mubr.f32.gmra.mrb[0].mxu0 %v413
        %v607 = vpop.f32.mrb[0].mxu0
        %v608 = vadd.f32 0.0, %v607
        %v609 = vpop.f32.mrb[0].mxu0
        %v610 = vadd.f32 0.0, %v609
        %611 = vmatprep.mubr.f32.mxu0 0.0
        %612 = vmatmul.mubr.f32.gmra.mrb[0].mxu0 %v416
        %v613 = vpop.f32.mrb[0].mxu0
        %v614 = vadd.f32 0.0, %v613
        %v615 = vpop.f32.mrb[0].mxu0
        %v616 = vadd.f32 0.0, %v615
        %617 = vmatprep.mubr.f32.mxu0 0.0
        %618 = vmatmul.mubr.f32.gmra.mrb[0].mxu0 %v419
        %v619 = vpop.f32.mrb[0].mxu0
        %v620 = vadd.f32 0.0, %v619
        %v621 = vpop.f32.mrb[0].mxu0
        %v622 = vadd.f32 0.0, %v621
        %623 = vmatprep.mubr.f32.mxu0 0.0
        %624 = vmatmul.mubr.f32.gmra.mrb[0].mxu0 %v422
        %v625 = vpop.f32.mrb[0].mxu0
        %v626 = vadd.f32 0.0, %v625
        %v627 = vpop.f32.mrb[0].mxu0
        %v628 = vadd.f32 0.0, %v627
        %629 = vmatprep.mubr.f32.mxu0 0.0
        %630 = vmatmul.mubr.f32.gmra.mrb[0].mxu0 %v425
        %v631 = vpop.f32.mrb[0].mxu0
        %v632 = vadd.f32 0.0, %v631
        %v633 = vpop.f32.mrb[0].mxu0
        %v634 = vadd.f32 0.0, %v633
        %635 = vmatprep.mubr.f32.mxu0 0.0
        %636 = vmatmul.mubr.f32.gmra.mrb[0].mxu0 %v428
        %v637 = vpop.f32.mrb[0].mxu0
        %v638 = vadd.f32 0.0, %v637
        %v639 = vpop.f32.mrb[0].mxu0
        %v640 = vadd.f32 0.0, %v639
        %641 = vmatprep.mubr.f32.mxu0 0.0
        %642 = vmatmul.mubr.f32.gmra.mrb[0].mxu0 %v431
        %v643 = vpop.f32.mrb[0].mxu0
        %v644 = vadd.f32 0.0, %v643
        %v645 = vpop.f32.mrb[0].mxu0
        %v646 = vadd.f32 0.0, %v645
        %647 = vmatprep.mubr.f32.mxu0 0.0
        %648 = vmatmul.mubr.f32.gmra.mrb[0].mxu0 %v434
        %v649 = vpop.f32.mrb[0].mxu0
        %v650 = vadd.f32 0.0, %v649
        %v651 = vpop.f32.mrb[0].mxu0
        %v652 = vadd.f32 0.0, %v651
        %653 = vmatprep.mubr.f32.mxu0 0.0
        %654 = vmatmul.mubr.f32.gmra.mrb[0].mxu0 %v437
        %v655 = vpop.f32.mrb[0].mxu0
        %v656 = vadd.f32 0.0, %v655
        %v657 = vpop.f32.mrb[0].mxu0
        %v658 = vadd.f32 0.0, %v657
        %659 = vmatprep.mubr.f32.mxu0 0.0
        %660 = vmatmul.mubr.f32.gmra.mrb[0].mxu0 %v440
        %v661 = vpop.f32.mrb[0].mxu0
        %v662 = vadd.f32 0.0, %v661
        %v663 = vpop.f32.mrb[0].mxu0
        %v664 = vadd.f32 0.0, %v663
        %665 = vmatprep.mubr.f32.mxu0 0.0
        %666 = vmatmul.mubr.f32.gmra.mrb[0].mxu0 %v443
        %v667 = vpop.f32.mrb[0].mxu0
        %v668 = vadd.f32 0.0, %v667
        %v669 = vpop.f32.mrb[0].mxu0
        %v670 = vadd.f32 0.0, %v669
        %671 = vmatprep.mubr.f32.mxu0 0.0
        %672 = vmatmul.mubr.f32.gmra.mrb[0].mxu0 %v446
        %v673 = vpop.f32.mrb[0].mxu0
        %v674 = vadd.f32 0.0, %v673
        %v675 = vpop.f32.mrb[0].mxu0
        %v676 = vadd.f32 0.0, %v675
        %677 = vmatprep.mubr.f32.mxu0 0.0
        %678 = vmatmul.mubr.f32.gmra.mrb[0].mxu0 %v449
        %v679 = vpop.f32.mrb[0].mxu0
        %v680 = vadd.f32 0.0, %v679
        %v681 = vpop.f32.mrb[0].mxu0
        %v682 = vadd.f32 0.0, %v681
        %683 = vmatprep.mubr.f32.mxu0 0.0
        %684 = vmatmul.mubr.f32.gmra.mrb[0].mxu0 %v452
        %v685 = vpop.f32.mrb[0].mxu0
        %v686 = vadd.f32 0.0, %v685
        %v687 = vpop.f32.mrb[0].mxu0
        %v688 = vadd.f32 0.0, %v687
        %689 = vmatprep.mubr.f32.mxu0 0.0
        %690 = vmatmul.mubr.f32.gmra.mrb[0].mxu0 %v455
        %v691 = vpop.f32.mrb[0].mxu0
        %v692 = vadd.f32 0.0, %v691
        %v693 = vpop.f32.mrb[0].mxu0
        %v694 = vadd.f32 0.0, %v693
        %695 = vmatprep.mubr.f32.mxu0 0.0
        %696 = vmatmul.mubr.f32.gmra.mrb[0].mxu0 %v458
        %v697 = vpop.f32.mrb[0].mxu0
        %v698 = vadd.f32 0.0, %v697
        %v699 = vpop.f32.mrb[0].mxu0
        %v700 = vadd.f32 0.0, %v699
        %701 = vmatprep.mubr.f32.mxu0 0.0
        %702 = vmatmul.mubr.f32.gmra.mrb[0].mxu0 %v461
        %v703 = vpop.f32.mrb[0].mxu0
        %v704 = vadd.f32 0.0, %v703
        %v705 = vpop.f32.mrb[0].mxu0
        %v706 = vadd.f32 0.0, %v705
        %707 = vmatprep.mubr.f32.mxu0 0.0
        %708 = vmatmul.mubr.f32.gmra.mrb[0].mxu0 %v464
        %v709 = vpop.f32.mrb[0].mxu0
        %v710 = vadd.f32 0.0, %v709
        %v711 = vpop.f32.mrb[0].mxu0
        %v712 = vadd.f32 0.0, %v711
        %713 = vmatprep.mubr.f32.mxu0 0.0
        %714 = vmatmul.mubr.f32.gmra.mrb[0].mxu0 %v467
        %v715 = vpop.f32.mrb[0].mxu0
        %v716 = vadd.f32 0.0, %v715
        %v717 = vpop.f32.mrb[0].mxu0
        %v718 = vadd.f32 0.0, %v717
        %719 = vmatprep.mubr.f32.mxu0 0.0
        %720 = vmatmul.mubr.f32.gmra.mrb[0].mxu0 %v470
        %v721 = vpop.f32.mrb[0].mxu0
        %v722 = vadd.f32 0.0, %v721
        %v723 = vpop.f32.mrb[0].mxu0
        %v724 = vadd.f32 0.0, %v723
        %725 = vmatprep.mubr.f32.mxu0 0.0
        %726 = vmatmul.mubr.f32.gmra.mrb[0].mxu0 %v473
        %v727 = vpop.f32.mrb[0].mxu0
        %v728 = vadd.f32 0.0, %v727
        %v729 = vpop.f32.mrb[0].mxu0
        %v730 = vadd.f32 0.0, %v729
        %731 = vdwg.mxu0
        %v732 = vmax.f32 %v542, %v544
        %733 = vmax.xlane.f32.xlu0 %v732
        %v734 = vpop.xlane.xlu0 %733
        %v735 = vmax.f32 %v548, %v550
        %736 = vmax.xlane.f32.xlu0 %v735
        %v737 = vpop.xlane.xlu0 %736
        %v738 = vmax.f32 %v554, %v556
        %739 = vmax.xlane.f32.xlu0 %v738
        %v740 = vpop.xlane.xlu0 %739
        %v741 = vmax.f32 %v560, %v562
        %742 = vmax.xlane.f32.xlu0 %v741
        %v743 = vpop.xlane.xlu0 %742
        %v744 = vmax.f32 %v566, %v568
        %745 = vmax.xlane.f32.xlu0 %v744
        %v746 = vpop.xlane.xlu0 %745
        %v747 = vmax.f32 %v572, %v574
        %748 = vmax.xlane.f32.xlu0 %v747
        %v749 = vpop.xlane.xlu0 %748
        %v750 = vmax.f32 %v578, %v580
        %751 = vmax.xlane.f32.xlu0 %v750
        %v752 = vpop.xlane.xlu0 %751
        %v753 = vmax.f32 %v584, %v586
        %754 = vmax.xlane.f32.xlu0 %v753
        %v755 = vpop.xlane.xlu0 %754
        %v756 = vmax.f32 %v590, %v592
        %757 = vmax.xlane.f32.xlu0 %v756
        %v758 = vpop.xlane.xlu0 %757
        %v759 = vmax.f32 %v596, %v598
        %760 = vmax.xlane.f32.xlu0 %v759
        %v761 = vpop.xlane.xlu0 %760
        %v762 = vmax.f32 %v602, %v604
        %763 = vmax.xlane.f32.xlu0 %v762
        %v764 = vpop.xlane.xlu0 %763
        %v765 = vmax.f32 %v608, %v610
        %766 = vmax.xlane.f32.xlu0 %v765
        %v767 = vpop.xlane.xlu0 %766
        %v768 = vmax.f32 %v614, %v616
        %769 = vmax.xlane.f32.xlu0 %v768
        %v770 = vpop.xlane.xlu0 %769
        %v771 = vmax.f32 %v620, %v622
        %772 = vmax.xlane.f32.xlu0 %v771
        %v773 = vpop.xlane.xlu0 %772
        %v774 = vmax.f32 %v626, %v628
        %775 = vmax.xlane.f32.xlu0 %v774
        %v776 = vpop.xlane.xlu0 %775
        %v777 = vmax.f32 %v632, %v634
        %778 = vmax.xlane.f32.xlu0 %v777
        %v779 = vpop.xlane.xlu0 %778
        %v780 = vmax.f32 %v638, %v640
        %781 = vmax.xlane.f32.xlu0 %v780
        %v782 = vpop.xlane.xlu0 %781
        %v783 = vmax.f32 %v644, %v646
        %784 = vmax.xlane.f32.xlu0 %v783
        %v785 = vpop.xlane.xlu0 %784
        %v786 = vmax.f32 %v650, %v652
        %787 = vmax.xlane.f32.xlu0 %v786
        %v788 = vpop.xlane.xlu0 %787
        %v789 = vmax.f32 %v656, %v658
        %790 = vmax.xlane.f32.xlu0 %v789
        %v791 = vpop.xlane.xlu0 %790
        %v792 = vmax.f32 %v662, %v664
        %793 = vmax.xlane.f32.xlu0 %v792
        %v794 = vpop.xlane.xlu0 %793
        %v795 = vmax.f32 %v668, %v670
        %796 = vmax.xlane.f32.xlu0 %v795
        %v797 = vpop.xlane.xlu0 %796
        %v798 = vmax.f32 %v674, %v676
        %799 = vmax.xlane.f32.xlu0 %v798
        %v800 = vpop.xlane.xlu0 %799
        %v801 = vmax.f32 %v680, %v682
        %802 = vmax.xlane.f32.xlu0 %v801
        %v803 = vpop.xlane.xlu0 %802
        %v804 = vmax.f32 %v686, %v688
        %805 = vmax.xlane.f32.xlu0 %v804
        %v806 = vpop.xlane.xlu0 %805
        %v807 = vmax.f32 %v692, %v694
        %808 = vmax.xlane.f32.xlu0 %v807
        %v809 = vpop.xlane.xlu0 %808
        %v810 = vmax.f32 %v698, %v700
        %811 = vmax.xlane.f32.xlu0 %v810
        %v812 = vpop.xlane.xlu0 %811
        %v813 = vmax.f32 %v704, %v706
        %814 = vmax.xlane.f32.xlu0 %v813
        %v815 = vpop.xlane.xlu0 %814
        %v816 = vmax.f32 %v710, %v712
        %817 = vmax.xlane.f32.xlu0 %v816
        %v818 = vpop.xlane.xlu0 %817
        %v819 = vmax.f32 %v716, %v718
        %820 = vmax.xlane.f32.xlu0 %v819
        %v821 = vpop.xlane.xlu0 %820
        %v822 = vmax.f32 %v722, %v724
        %823 = vmax.xlane.f32.xlu0 %v822
        %v824 = vpop.xlane.xlu0 %823
        %v825 = vmax.f32 %v728, %v730
        %826 = vmax.xlane.f32.xlu0 %v825
        %v827 = vpop.xlane.xlu0 %826
        %v828 = vsub.f32 %v542, %v734
        %v829 = vsub.f32 %v544, %v734
        %v830 = vsub.f32 %v548, %v737
        %v831 = vsub.f32 %v550, %v737
        %v832 = vsub.f32 %v554, %v740
        %v833 = vsub.f32 %v556, %v740
        %v834 = vsub.f32 %v560, %v743
        %v835 = vsub.f32 %v562, %v743
        %v836 = vsub.f32 %v566, %v746
        %v837 = vsub.f32 %v568, %v746
        %v838 = vsub.f32 %v572, %v749
        %v839 = vsub.f32 %v574, %v749
        %v840 = vsub.f32 %v578, %v752
        %v841 = vsub.f32 %v580, %v752
        %v842 = vsub.f32 %v584, %v755
        %v843 = vsub.f32 %v586, %v755
        %v844 = vsub.f32 %v590, %v758
        %v845 = vsub.f32 %v592, %v758
        %v846 = vsub.f32 %v596, %v761
        %v847 = vsub.f32 %v598, %v761
        %v848 = vsub.f32 %v602, %v764
        %v849 = vsub.f32 %v604, %v764
        %v850 = vsub.f32 %v608, %v767
        %v851 = vsub.f32 %v610, %v767
        %v852 = vsub.f32 %v614, %v770
        %v853 = vsub.f32 %v616, %v770
        %v854 = vsub.f32 %v620, %v773
        %v855 = vsub.f32 %v622, %v773
        %v856 = vsub.f32 %v626, %v776
        %v857 = vsub.f32 %v628, %v776
        %v858 = vsub.f32 %v632, %v779
        %v859 = vsub.f32 %v634, %v779
        %v860 = vsub.f32 %v638, %v782
        %v861 = vsub.f32 %v640, %v782
        %v862 = vsub.f32 %v644, %v785
        %v863 = vsub.f32 %v646, %v785
        %v864 = vsub.f32 %v650, %v788
        %v865 = vsub.f32 %v652, %v788
        %v866 = vsub.f32 %v656, %v791
        %v867 = vsub.f32 %v658, %v791
        %v868 = vsub.f32 %v662, %v794
        %v869 = vsub.f32 %v664, %v794
        %v870 = vsub.f32 %v668, %v797
        %v871 = vsub.f32 %v670, %v797
        %v872 = vsub.f32 %v674, %v800
        %v873 = vsub.f32 %v676, %v800
        %v874 = vsub.f32 %v680, %v803
        %v875 = vsub.f32 %v682, %v803
        %v876 = vsub.f32 %v686, %v806
        %v877 = vsub.f32 %v688, %v806
        %v878 = vsub.f32 %v692, %v809
        %v879 = vsub.f32 %v694, %v809
        %v880 = vsub.f32 %v698, %v812
        %v881 = vsub.f32 %v700, %v812
        %v882 = vsub.f32 %v704, %v815
        %v883 = vsub.f32 %v706, %v815
        %v884 = vsub.f32 %v710, %v818
        %v885 = vsub.f32 %v712, %v818
        %v886 = vsub.f32 %v716, %v821
        %v887 = vsub.f32 %v718, %v821
        %v888 = vsub.f32 %v722, %v824
        %v889 = vsub.f32 %v724, %v824
        %v890 = vsub.f32 %v728, %v827
        %v891 = vsub.f32 %v730, %v827
        %v892 = vmul.f32 %v828, 1.442695
        %v893 = vpow.pop %v892
        %v894 = vmul.f32 %v829, 1.442695
        %v895 = vpow.pop %v894
        %v896 = vmul.f32 %v830, 1.442695
        %v897 = vpow.pop %v896
        %v898 = vmul.f32 %v831, 1.442695
        %v899 = vpow.pop %v898
        %v900 = vmul.f32 %v832, 1.442695
        %v901 = vpow.pop %v900
        %v902 = vmul.f32 %v833, 1.442695
        %v903 = vpow.pop %v902
        %v904 = vmul.f32 %v834, 1.442695
        %v905 = vpow.pop %v904
        %v906 = vmul.f32 %v835, 1.442695
        %v907 = vpow.pop %v906
        %v908 = vmul.f32 %v836, 1.442695
        %v909 = vpow.pop %v908
        %v910 = vmul.f32 %v837, 1.442695
        %v911 = vpow.pop %v910
        %v912 = vmul.f32 %v838, 1.442695
        %v913 = vpow.pop %v912
        %v914 = vmul.f32 %v839, 1.442695
        %v915 = vpow.pop %v914
        %v916 = vmul.f32 %v840, 1.442695
        %v917 = vpow.pop %v916
        %v918 = vmul.f32 %v841, 1.442695
        %v919 = vpow.pop %v918
        %v920 = vmul.f32 %v842, 1.442695
        %v921 = vpow.pop %v920
        %v922 = vmul.f32 %v843, 1.442695
        %v923 = vpow.pop %v922
        %v924 = vmul.f32 %v844, 1.442695
        %v925 = vpow.pop %v924
        %v926 = vmul.f32 %v845, 1.442695
        %v927 = vpow.pop %v926
        %v928 = vmul.f32 %v846, 1.442695
        %v929 = vpow.pop %v928
        %v930 = vmul.f32 %v847, 1.442695
        %v931 = vpow.pop %v930
        %v932 = vmul.f32 %v848, 1.442695
        %v933 = vpow.pop %v932
        %v934 = vmul.f32 %v849, 1.442695
        %v935 = vpow.pop %v934
        %v936 = vmul.f32 %v850, 1.442695
        %v937 = vpow.pop %v936
        %v938 = vmul.f32 %v851, 1.442695
        %v939 = vpow.pop %v938
        %v940 = vmul.f32 %v852, 1.442695
        %v941 = vpow.pop %v940
        %v942 = vmul.f32 %v853, 1.442695
        %v943 = vpow.pop %v942
        %v944 = vmul.f32 %v854, 1.442695
        %v945 = vpow.pop %v944
        %v946 = vmul.f32 %v855, 1.442695
        %v947 = vpow.pop %v946
        %v948 = vmul.f32 %v856, 1.442695
        %v949 = vpow.pop %v948
        %v950 = vmul.f32 %v857, 1.442695
        %v951 = vpow.pop %v950
        %v952 = vmul.f32 %v858, 1.442695
        %v953 = vpow.pop %v952
        %v954 = vmul.f32 %v859, 1.442695
        %v955 = vpow.pop %v954
        %v956 = vmul.f32 %v860, 1.442695
        %v957 = vpow.pop %v956
        %v958 = vmul.f32 %v861, 1.442695
        %v959 = vpow.pop %v958
        %v960 = vmul.f32 %v862, 1.442695
        %v961 = vpow.pop %v960
        %v962 = vmul.f32 %v863, 1.442695
        %v963 = vpow.pop %v962
        %v964 = vmul.f32 %v864, 1.442695
        %v965 = vpow.pop %v964
        %v966 = vmul.f32 %v865, 1.442695
        %v967 = vpow.pop %v966
        %v968 = vmul.f32 %v866, 1.442695
        %v969 = vpow.pop %v968
        %v970 = vmul.f32 %v867, 1.442695
        %v971 = vpow.pop %v970
        %v972 = vmul.f32 %v868, 1.442695
        %v973 = vpow.pop %v972
        %v974 = vmul.f32 %v869, 1.442695
        %v975 = vpow.pop %v974
        %v976 = vmul.f32 %v870, 1.442695
        %v977 = vpow.pop %v976
        %v978 = vmul.f32 %v871, 1.442695
        %v979 = vpow.pop %v978
        %v980 = vmul.f32 %v872, 1.442695
        %v981 = vpow.pop %v980
        %v982 = vmul.f32 %v873, 1.442695
        %v983 = vpow.pop %v982
        %v984 = vmul.f32 %v874, 1.442695
        %v985 = vpow.pop %v984
        %v986 = vmul.f32 %v875, 1.442695
        %v987 = vpow.pop %v986
        %v988 = vmul.f32 %v876, 1.442695
        %v989 = vpow.pop %v988
        %v990 = vmul.f32 %v877, 1.442695
        %v991 = vpow.pop %v990
        %v992 = vmul.f32 %v878, 1.442695
        %v993 = vpow.pop %v992
        %v994 = vmul.f32 %v879, 1.442695
        %v995 = vpow.pop %v994
        %v996 = vmul.f32 %v880, 1.442695
        %v997 = vpow.pop %v996
        %v998 = vmul.f32 %v881, 1.442695
        %v999 = vpow.pop %v998
        %v1000 = vmul.f32 %v882, 1.442695
        %v1001 = vpow.pop %v1000
        %v1002 = vmul.f32 %v883, 1.442695
        %v1003 = vpow.pop %v1002
        %v1004 = vmul.f32 %v884, 1.442695
        %v1005 = vpow.pop %v1004
        %v1006 = vmul.f32 %v885, 1.442695
        %v1007 = vpow.pop %v1006
        %v1008 = vmul.f32 %v886, 1.442695
        %v1009 = vpow.pop %v1008
        %v1010 = vmul.f32 %v887, 1.442695
        %v1011 = vpow.pop %v1010
        %v1012 = vmul.f32 %v888, 1.442695
        %v1013 = vpow.pop %v1012
        %v1014 = vmul.f32 %v889, 1.442695
        %v1015 = vpow.pop %v1014
        %v1016 = vmul.f32 %v890, 1.442695
        %v1017 = vpow.pop %v1016
        %v1018 = vmul.f32 %v891, 1.442695
        %v1019 = vpow.pop %v1018
        %1020 = vmatprep.subr.mxu0 %v895
        %1021 = vmatpush1.xpose.msra.mxu0 %v893
        %1022 = vmatprep.subr.mxu0 %v899
        %1023 = vmatpush1.xpose.msra.mxu0 %v897
        %1024 = vmatprep.subr.mxu0 %v903
        %1025 = vmatpush1.xpose.msra.mxu0 %v901
        %1026 = vmatprep.subr.mxu0 %v907
        %1027 = vmatpush1.xpose.msra.mxu0 %v905
        %1028 = vmatprep.subr.mxu0 %v911
        %1029 = vmatpush1.xpose.msra.mxu0 %v909
        %1030 = vmatprep.subr.mxu0 %v915
        %1031 = vmatpush1.xpose.msra.mxu0 %v913
        %1032 = vmatprep.subr.mxu0 %v919
        %1033 = vmatpush1.xpose.msra.mxu0 %v917
        %1034 = vmatprep.subr.mxu0 %v923
        %1035 = vmatpush1.xpose.msra.mxu0 %v921
        %1036 = vmatprep.subr.mxu0 %v927
        %1037 = vmatpush1.xpose.msra.mxu0 %v925
        %1038 = vmatprep.subr.mxu0 %v931
        %1039 = vmatpush1.xpose.msra.mxu0 %v929
        %1040 = vmatprep.subr.mxu0 %v935
        %1041 = vmatpush1.xpose.msra.mxu0 %v933
        %1042 = vmatprep.subr.mxu0 %v939
        %1043 = vmatpush1.xpose.msra.mxu0 %v937
        %1044 = vmatprep.subr.mxu0 %v943
        %1045 = vmatpush1.xpose.msra.mxu0 %v941
        %1046 = vmatprep.subr.mxu0 %v947
        %1047 = vmatpush1.xpose.msra.mxu0 %v945
        %1048 = vmatprep.subr.mxu0 %v951
        %1049 = vmatpush1.xpose.msra.mxu0 %v949
        %1050 = vmatprep.subr.mxu0 %v955
        %1051 = vmatpush1.xpose.msra.mxu0 %v953
        %1052 = vmatprep.subr.mxu0 %v959
        %1053 = vmatpush1.xpose.msra.mxu0 %v957
        %1054 = vmatprep.subr.mxu0 %v963
        %1055 = vmatpush1.xpose.msra.mxu0 %v961
        %1056 = vmatprep.subr.mxu0 %v967
        %1057 = vmatpush1.xpose.msra.mxu0 %v965
        %1058 = vmatprep.subr.mxu0 %v971
        %1059 = vmatpush1.xpose.msra.mxu0 %v969
        %1060 = vmatprep.subr.mxu0 %v975
        %1061 = vmatpush1.xpose.msra.mxu0 %v973
        %1062 = vmatprep.subr.mxu0 %v979
        %1063 = vmatpush1.xpose.msra.mxu0 %v977
        %1064 = vmatprep.subr.mxu0 %v983
        %1065 = vmatpush1.xpose.msra.mxu0 %v981
        %1066 = vmatprep.subr.mxu0 %v987
        %1067 = vmatpush1.xpose.msra.mxu0 %v985
        %1068 = vmatprep.subr.mxu0 %v991
        %1069 = vmatpush1.xpose.msra.mxu0 %v989
        %1070 = vmatprep.subr.mxu0 %v995
        %1071 = vmatpush1.xpose.msra.mxu0 %v993
        %1072 = vmatprep.subr.mxu0 %v999
        %1073 = vmatpush1.xpose.msra.mxu0 %v997
        %1074 = vmatprep.subr.mxu0 %v1003
        %1075 = vmatpush1.xpose.msra.mxu0 %v1001
        %1076 = vmatprep.subr.mxu0 %v1007
        %1077 = vmatpush1.xpose.msra.mxu0 %v1005
        %1078 = vmatprep.subr.mxu0 %v1011
        %1079 = vmatpush1.xpose.msra.mxu0 %v1009
        %1080 = vmatprep.subr.mxu0 %v1015
        %1081 = vmatpush1.xpose.msra.mxu0 %v1013
        %1082 = vmatprep.subr.mxu0 %v1019
        %1083 = vmatpush1.xpose.msra.mxu0 %v1017
        %1084 = vmatprep.mubr.f32.mxu0 1.0
        %1085 = vmatmul.mubr.f32.gmra.mrb[0].mxu0 1.0
        %v1086 = vpop.f32.mrb[0].mxu0
        %v1087 = vadd.f32 0.0, %v1086
        %v1088 = vpop.f32.mrb[0].mxu0
        %v1089 = vadd.f32 0.0, %v1088
        %1090 = vdwg.mxu0
        %v1091 = vrcp.pop %v1087
        %v1092 = vrcp.pop %v1089
        %v1093 = vlaneseq
        %v1094 = vshrl.u32 %v1093, 7
        %v1095 = vsub.s32 0, %v1094
        %v1096 = vrot.slane %v1091, %v1095
        %v1097 = vlaneseq
        %v1098 = vshrl.u32 %v1097, 7
        %v1099 = vsub.s32 0, %v1098
        %v1100 = vrot.slane %v1092, %v1099
        %v1101 = vmul.f32 %v305, %v1096
        %v1102 = vmul.f32 %v307, %v1100
        %v1103 = vmul.f32 %v311, %v1096
        %v1104 = vmul.f32 %v313, %v1100
        %1105 = vmatprep.subr.mxu0 %v895
        %1106 = vmatpush1.msra.mxu0 %v893
        %1107 = vmatprep.subr.mxu0 %v899
        %1108 = vmatpush1.msra.mxu0 %v897
        %1109 = vmatprep.subr.mxu0 %v903
        %1110 = vmatpush1.msra.mxu0 %v901
        %1111 = vmatprep.subr.mxu0 %v907
        %1112 = vmatpush1.msra.mxu0 %v905
        %1113 = vmatprep.subr.mxu0 %v911
        %1114 = vmatpush1.msra.mxu0 %v909
        %1115 = vmatprep.subr.mxu0 %v915
        %1116 = vmatpush1.msra.mxu0 %v913
        %1117 = vmatprep.subr.mxu0 %v919
        %1118 = vmatpush1.msra.mxu0 %v917
        %1119 = vmatprep.subr.mxu0 %v923
        %1120 = vmatpush1.msra.mxu0 %v921
        %1121 = vmatprep.subr.mxu0 %v927
        %1122 = vmatpush1.msra.mxu0 %v925
        %1123 = vmatprep.subr.mxu0 %v931
        %1124 = vmatpush1.msra.mxu0 %v929
        %1125 = vmatprep.subr.mxu0 %v935
        %1126 = vmatpush1.msra.mxu0 %v933
        %1127 = vmatprep.subr.mxu0 %v939
        %1128 = vmatpush1.msra.mxu0 %v937
        %1129 = vmatprep.subr.mxu0 %v943
        %1130 = vmatpush1.msra.mxu0 %v941
        %1131 = vmatprep.subr.mxu0 %v947
        %1132 = vmatpush1.msra.mxu0 %v945
        %1133 = vmatprep.subr.mxu0 %v951
        %1134 = vmatpush1.msra.mxu0 %v949
        %1135 = vmatprep.subr.mxu0 %v955
        %1136 = vmatpush1.msra.mxu0 %v953
        %1137 = vmatprep.subr.mxu0 %v959
        %1138 = vmatpush1.msra.mxu0 %v957
        %1139 = vmatprep.subr.mxu0 %v963
        %1140 = vmatpush1.msra.mxu0 %v961
        %1141 = vmatprep.subr.mxu0 %v967
        %1142 = vmatpush1.msra.mxu0 %v965
        %1143 = vmatprep.subr.mxu0 %v971
        %1144 = vmatpush1.msra.mxu0 %v969
        %1145 = vmatprep.subr.mxu0 %v975
        %1146 = vmatpush1.msra.mxu0 %v973
        %1147 = vmatprep.subr.mxu0 %v979
        %1148 = vmatpush1.msra.mxu0 %v977
        %1149 = vmatprep.subr.mxu0 %v983
        %1150 = vmatpush1.msra.mxu0 %v981
        %1151 = vmatprep.subr.mxu0 %v987
        %1152 = vmatpush1.msra.mxu0 %v985
        %1153 = vmatprep.subr.mxu0 %v991
        %1154 = vmatpush1.msra.mxu0 %v989
        %1155 = vmatprep.subr.mxu0 %v995
        %1156 = vmatpush1.msra.mxu0 %v993
        %1157 = vmatprep.subr.mxu0 %v999
        %1158 = vmatpush1.msra.mxu0 %v997
        %1159 = vmatprep.subr.mxu0 %v1003
        %1160 = vmatpush1.msra.mxu0 %v1001
        %1161 = vmatprep.subr.mxu0 %v1007
        %1162 = vmatpush1.msra.mxu0 %v1005
        %1163 = vmatprep.subr.mxu0 %v1011
        %1164 = vmatpush1.msra.mxu0 %v1009
        %1165 = vmatprep.subr.mxu0 %v1015
        %1166 = vmatpush1.msra.mxu0 %v1013
        %1167 = vmatprep.subr.mxu0 %v1019
        %1168 = vmatpush1.msra.mxu0 %v1017
        %1169 = vmatprep.mubr.f32.mxu0 %v1102
        %1170 = vmatmul.mubr.f32.gmra.mrb[0].mxu0 %v1101
        %v1171 = vpop.f32.mrb[0].mxu0
        %v1172 = vadd.f32 0.0, %v1171
        %v1173 = vpop.f32.mrb[0].mxu0
        %v1174 = vadd.f32 0.0, %v1173
        %1175 = vmatprep.mubr.f32.mxu0 %v1104
        %1176 = vmatmul.mubr.f32.gmra.mrb[0].mxu0 %v1103
        %v1177 = vpop.f32.mrb[0].mxu0
        %v1178 = vadd.f32 0.0, %v1177
        %v1179 = vpop.f32.mrb[0].mxu0
        %v1180 = vadd.f32 0.0, %v1179
        %1181 = vdwg.mxu0
        %1182 = vmatprep.subr.mxu0 %v210
        %1183 = vmatpush1.xpose.msra.mxu0 %v209
        %1184 = vmatprep.subr.mxu0 %v212
        %1185 = vmatpush1.xpose.msra.mxu0 %v211
        %1186 = vmatprep.subr.mxu0 0.0
        %1187 = vmatpush1.xpose.msra.mxu0 0.0
        %1188 = vmatprep.subr.mxu0 0.0
        %1189 = vmatpush1.xpose.msra.mxu0 0.0
        %1190 = vmatprep.subr.mxu0 0.0
        %1191 = vmatpush1.xpose.msra.mxu0 0.0
        %1192 = vmatprep.subr.mxu0 0.0
        %1193 = vmatpush1.xpose.msra.mxu0 0.0
        %1194 = vmatprep.subr.mxu0 0.0
        %1195 = vmatpush1.xpose.msra.mxu0 0.0
        %1196 = vmatprep.subr.mxu0 0.0
        %1197 = vmatpush1.xpose.msra.mxu0 0.0
        %1198 = vmatprep.subr.mxu0 0.0
        %1199 = vmatpush1.xpose.msra.mxu0 0.0
        %1200 = vmatprep.subr.mxu0 0.0
        %1201 = vmatpush1.xpose.msra.mxu0 0.0
        %1202 = vmatprep.subr.mxu0 0.0
        %1203 = vmatpush1.xpose.msra.mxu0 0.0
        %1204 = vmatprep.subr.mxu0 0.0
        %1205 = vmatpush1.xpose.msra.mxu0 0.0
        %1206 = vmatprep.subr.mxu0 0.0
        %1207 = vmatpush1.xpose.msra.mxu0 0.0
        %1208 = vmatprep.subr.mxu0 0.0
        %1209 = vmatpush1.xpose.msra.mxu0 0.0
        %1210 = vmatprep.subr.mxu0 0.0
        %1211 = vmatpush1.xpose.msra.mxu0 0.0
        %1212 = vmatprep.subr.mxu0 0.0
        %1213 = vmatpush1.xpose.msra.mxu0 0.0
        %1214 = vmatprep.subr.mxu0 0.0
        %1215 = vmatpush1.xpose.msra.mxu0 0.0
        %1216 = vmatprep.subr.mxu0 0.0
        %1217 = vmatpush1.xpose.msra.mxu0 0.0
        %1218 = vmatprep.subr.mxu0 0.0
        %1219 = vmatpush1.xpose.msra.mxu0 0.0
        %1220 = vmatprep.subr.mxu0 0.0
        %1221 = vmatpush1.xpose.msra.mxu0 0.0
        %1222 = vmatprep.subr.mxu0 0.0
        %1223 = vmatpush1.xpose.msra.mxu0 0.0
        %1224 = vmatprep.subr.mxu0 0.0
        %1225 = vmatpush1.xpose.msra.mxu0 0.0
        %1226 = vmatprep.subr.mxu0 0.0
        %1227 = vmatpush1.xpose.msra.mxu0 0.0
        %1228 = vmatprep.subr.mxu0 0.0
        %1229 = vmatpush1.xpose.msra.mxu0 0.0
        %1230 = vmatprep.subr.mxu0 0.0
        %1231 = vmatpush1.xpose.msra.mxu0 0.0
        %1232 = vmatprep.subr.mxu0 0.0
        %1233 = vmatpush1.xpose.msra.mxu0 0.0
        %1234 = vmatprep.subr.mxu0 0.0
        %1235 = vmatpush1.xpose.msra.mxu0 0.0
        %1236 = vmatprep.subr.mxu0 0.0
        %1237 = vmatpush1.xpose.msra.mxu0 0.0
        %1238 = vmatprep.subr.mxu0 0.0
        %1239 = vmatpush1.xpose.msra.mxu0 0.0
        %1240 = vmatprep.subr.mxu0 0.0
        %1241 = vmatpush1.xpose.msra.mxu0 0.0
        %1242 = vmatprep.subr.mxu0 0.0
        %1243 = vmatpush1.xpose.msra.mxu0 0.0
        %1244 = vmatprep.subr.mxu0 0.0
        %1245 = vmatpush1.xpose.msra.mxu0 0.0
        %1246 = vmatprep.mubr.f32.mxu0 %v210
        %1247 = vmatmul.mubr.f32.gmra.mrb[0].mxu0 %v209
        %v1248 = vpop.f32.mrb[0].mxu0
        %v1249 = vadd.f32 0.0, %v1248
        %v1250 = vpop.f32.mrb[0].mxu0
        %1251 = vmatprep.mubr.f32.mxu0 %v212
        %1252 = vmatmul.mubr.f32.gmra.mrb[0].mxu0 %v211
        %v1253 = vpop.f32.mrb[0].mxu0
        %v1254 = vadd.f32 0.0, %v1253
        %v1255 = vpop.f32.mrb[0].mxu0
        %1256 = vdwg.mxu0
        %v1257 = vsel %vm213, %v1249, -inf
        %1258 = vmax.xlane.f32.xlu0 %v1257
        %v1259 = vpop.xlane.xlu0 %1258
        %v1260 = vsel %vm213, %v1254, -inf
        %1261 = vmax.xlane.f32.xlu0 %v1260
        %v1262 = vpop.xlane.xlu0 %1261
        %v1263 = vsub.f32 %v1249, %v1259
        %v1264 = vsub.f32 %v1254, %v1262
        %v1265 = vmul.f32 %v1263, 1.442695
        %v1266 = vpow.pop %v1265
        %v1267 = vmul.f32 %v1264, 1.442695
        %v1268 = vpow.pop %v1267
        %v1269 = vsel %vm213, %v1266, 0.0
        %1270 = vadd.xlane.f32.xlu0 %v1269
        %v1271 = vpop.xlane.xlu0 %1270
        %v1272 = vsel %vm213, %v1268, 0.0
        %1273 = vadd.xlane.f32.xlu0 %v1272
        %v1274 = vpop.xlane.xlu0 %1273
        %v1275 = vrcp.pop %v1271
        %v1276 = vrcp.pop %v1274
        %v1277 = vmul.f32 %v1266, %v1275
        %v1278 = vmul.f32 %v1268, %v1276
        %v1280 = vsel %vm213, %v1277, 0
        %v1283 = vsel %vm213, %v1278, 0
        %1285 = vmatprep.subr.mxu0 %v210
        %1286 = vmatpush1.msra.mxu0 %v209
        %1287 = vmatprep.subr.mxu0 %v212
        %1288 = vmatpush1.msra.mxu0 %v211
        %1289 = vmatprep.subr.mxu0 0.0
        %1290 = vmatpush1.msra.mxu0 0.0
        %1291 = vmatprep.subr.mxu0 0.0
        %1292 = vmatpush1.msra.mxu0 0.0
        %1293 = vmatprep.subr.mxu0 0.0
        %1294 = vmatpush1.msra.mxu0 0.0
        %1295 = vmatprep.subr.mxu0 0.0
        %1296 = vmatpush1.msra.mxu0 0.0
        %1297 = vmatprep.subr.mxu0 0.0
        %1298 = vmatpush1.msra.mxu0 0.0
        %1299 = vmatprep.subr.mxu0 0.0
        %1300 = vmatpush1.msra.mxu0 0.0
        %1301 = vmatprep.subr.mxu0 0.0
        %1302 = vmatpush1.msra.mxu0 0.0
        %1303 = vmatprep.subr.mxu0 0.0
        %1304 = vmatpush1.msra.mxu0 0.0
        %1305 = vmatprep.subr.mxu0 0.0
        %1306 = vmatpush1.msra.mxu0 0.0
        %1307 = vmatprep.subr.mxu0 0.0
        %1308 = vmatpush1.msra.mxu0 0.0
        %1309 = vmatprep.subr.mxu0 0.0
        %1310 = vmatpush1.msra.mxu0 0.0
        %1311 = vmatprep.subr.mxu0 0.0
        %1312 = vmatpush1.msra.mxu0 0.0
        %1313 = vmatprep.subr.mxu0 0.0
        %1314 = vmatpush1.msra.mxu0 0.0
        %1315 = vmatprep.subr.mxu0 0.0
        %1316 = vmatpush1.msra.mxu0 0.0
        %1317 = vmatprep.subr.mxu0 0.0
        %1318 = vmatpush1.msra.mxu0 0.0
        %1319 = vmatprep.subr.mxu0 0.0
        %1320 = vmatpush1.msra.mxu0 0.0
        %1321 = vmatprep.subr.mxu0 0.0
        %1322 = vmatpush1.msra.mxu0 0.0
        %1323 = vmatprep.subr.mxu0 0.0
        %1324 = vmatpush1.msra.mxu0 0.0
        %1325 = vmatprep.subr.mxu0 0.0
        %1326 = vmatpush1.msra.mxu0 0.0
        %1327 = vmatprep.subr.mxu0 0.0
        %1328 = vmatpush1.msra.mxu0 0.0
        %1329 = vmatprep.subr.mxu0 0.0
        %1330 = vmatpush1.msra.mxu0 0.0
        %1331 = vmatprep.subr.mxu0 0.0
        %1332 = vmatpush1.msra.mxu0 0.0
        %1333 = vmatprep.subr.mxu0 0.0
        %1334 = vmatpush1.msra.mxu0 0.0
        %1335 = vmatprep.subr.mxu0 0.0
        %1336 = vmatpush1.msra.mxu0 0.0
        %1337 = vmatprep.subr.mxu0 0.0
        %1338 = vmatpush1.msra.mxu0 0.0
        %1339 = vmatprep.subr.mxu0 0.0
        %1340 = vmatpush1.msra.mxu0 0.0
        %1341 = vmatprep.subr.mxu0 0.0
        %1342 = vmatpush1.msra.mxu0 0.0
        %1343 = vmatprep.subr.mxu0 0.0
        %1344 = vmatpush1.msra.mxu0 0.0
        %1345 = vmatprep.subr.mxu0 0.0
        %1346 = vmatpush1.msra.mxu0 0.0
        %1347 = vmatprep.subr.mxu0 0.0
        %1348 = vmatpush1.msra.mxu0 0.0
        %1349 = vmatprep.mubr.f32.mxu0 0.0
        %1350 = vmatmul.mubr.f32.gmra.mrb[0].mxu0 %v1280
        %v1351 = vpop.f32.mrb[0].mxu0
        %v1352 = vadd.f32 0.0, %v1351
        %v1353 = vpop.f32.mrb[0].mxu0
        %v1354 = vadd.f32 0.0, %v1353
        %1355 = vmatprep.mubr.f32.mxu0 0.0
        %1356 = vmatmul.mubr.f32.gmra.mrb[0].mxu0 %v1283
        %v1357 = vpop.f32.mrb[0].mxu0
        %v1358 = vadd.f32 0.0, %v1357
        %v1359 = vpop.f32.mrb[0].mxu0
        %v1360 = vadd.f32 0.0, %v1359
        %1361 = vdwg.mxu0
        %v1362 = vmul.f32 %v209, 2.0
        %v1363 = vmul.f32 %v210, 2.0
        %v1364 = vmul.f32 %v211, 2.0
        %v1365 = vmul.f32 %v212, 2.0
        %v1366 = vstv %s207
        %v1367 = vmul.f32 %v1366, %v1172
        %v1368 = vmul.f32 %v1366, %v1174
        %v1369 = vmul.f32 %v1366, %v1178
        %v1370 = vmul.f32 %v1366, %v1180
        %v1371 = vadd.f32 %v1362, %v1367
        %v1372 = vadd.f32 %v1363, %v1368
        %v1373 = vadd.f32 %v1364, %v1369
        %v1374 = vadd.f32 %v1365, %v1370
        %v1375 = vstv %s208
        %v1376 = vmul.f32 %v1375, %v1352
        %v1377 = vmul.f32 %v1375, %v1354
        %v1378 = vmul.f32 %v1375, %v1358
        %v1379 = vmul.f32 %v1375, %v1360
        %v1380 = vadd.f32 %v1371, %v1376
        %v1381 = vadd.f32 %v1372, %v1377
        %v1382 = vadd.f32 %v1373, %v1378
        %v1383 = vadd.f32 %v1374, %v1379
        %1384 = vst [vmem:[%s202] sm:$0xff] %v1380
        %1385 = vst [vmem:[%s202 + $0x8] sm:$0xff] %v1381
        %1386 = vst [vmem:[%s202 + $0x10] sm:$0xff] %v1382
        %1387 = vst [vmem:[%s202 + $0x18] sm:$0xff] %v1383
        %s1388 = sand.u32 %s97, 1
        %s1389 = scalar_lea.sflag [#allocation4], %s1388
        %s1390 = sand.u32 %s97, 1
        %s1391 = smul.addr %s1390, 32
        %s1392 = scalar_lea.vmem [#allocation7], %s1391
        // Predicated region
        $region41: #{tpu_custom_call.1} parent=31 // pred_check
          %p1393 = pneg %p107
        $region42: #{tpu_custom_call.1} parent=31 // pred_check_branch
          %1395 = sbr.rel (%p1393) target = $region44
        $region43: #{tpu_custom_call.1} parent=31 // pred_region
          %s1397 = ssub.s32 512, 512
          %1398 = vsyncadd %s1389, %s1397
          %s1399 = smul.addr %s21, 4
          %s1400 = smul.addr %s1399, 128
          %s1401 = scalar_lea.hbm %s3, %s1400
          %s1402 = sshll.u32 %s1392, 4
          %s1403 = int_to_ptr.vmem [resolvable:$true] %s1402
          %1408 = dma.vmem_to_hbm [thread:$0]  %s1403, 512, %s1401, %s1389, 256, 256, 16
        $region44: #{tpu_custom_call.1} parent=31 // pred_fallthru
          _
      $region32: #{tpu_custom_call.1} parent=5 // pred_fallthru
        _
      %p1409 = scmp.le.s32.totalorder 2, %s16
      // Predicated region
      $region45: #{tpu_custom_call.1} parent=5 // pred_check
        %p1410 = pneg %p1409
      $region46: #{tpu_custom_call.1} parent=5 // pred_check_branch
        %1412 = sbr.rel (%p1410) target = $region48
      $region47: #{tpu_custom_call.1} parent=5 // pred_region
        %s1413 = ssub.s32 %s16, 2
        // Predicated region
        $region49: #{tpu_custom_call.1} parent=47 // pred_check
          %p1414 = pneg %p113
        $region50: #{tpu_custom_call.1} parent=47 // pred_check_branch
          %1416 = sbr.rel (%p1414) target = $region52
        $region51: #{tpu_custom_call.1} parent=47 // pred_region
          %s1417 = sand.u32 %s98, 1
          %s1418 = scalar_lea.sflag [#allocation4], %s1417
          %s1419 = sand.u32 %s98, 1
          %s1420 = smul.addr %s1419, 32
          %s1421 = scalar_lea.vmem [#allocation7], %s1420
          %1422 = dma.done %s1418, 512
        $region52: #{tpu_custom_call.1} parent=47 // pred_fallthru
          _
      $region48: #{tpu_custom_call.1} parent=5 // pred_fallthru
        _
    $region6: #{tpu_custom_call.1} parent=1 // loop_footer
      %s20 = sadd.s32 1, %s16
    $region7: #{tpu_custom_call.1} parent=1 // loop_footer_branch
      %15 = sbr.rel target = $region3
    $region8: #{tpu_custom_call.1} parent=1 // loop_exit
      _
    %1423 = vsyncpa [#allocation3], 1
    %s1424 = scalar_lea.sflag [#allocation3], 1
    %1425 = vsyncpa %s1424, 1
    %1426 = vsyncpa [#allocation4], 1
    %s1427 = scalar_lea.sflag [#allocation4], 1
    %1428 = vsyncpa %s1427, 1
    %1429 = vsyncpa [#allocation5], 1
    %s1430 = scalar_lea.sflag [#allocation5], 1
    %1431 = vsyncpa %s1430, 1

</llo_original>
